<compile_context>
chip_gen: v7x
topology: tpu7x:2x2x1
jax: 0.10.0
libtpu: 0.0.40
codegen_flags: <defaults>
</compile_context>

<pallas_src>
import jax
import jax.numpy as jnp
from jax.experimental import pallas as pl
from jax.experimental.pallas import tpu as pltpu


def _ceil_to(x: int, m: int) -> int:
    return ((x + m - 1) // m) * m


def _sublane_multiple(dtype) -> int:
    # (8, 128) f32 tiling; 16-bit packs 2 rows/sublane, 8-bit packs 4.
    return {4: 8, 2: 16, 1: 32}.get(jnp.dtype(dtype).itemsize, 8)


# ----------------------------- small-input path ------------------------------

def _make_small_kernel(seq_len: int):
    """Whole array in one VMEM block; no grid, no masking needed."""

    def kernel(x_ref, o_ref):
        x = x_ref[...].astype(jnp.float32)
        recip = pl.reciprocal(x, approx=False)            # exact, EUP slot
        total = jnp.sum(recip, axis=1, keepdims=True)     # (batch, 1)
        o_ref[...] = (jnp.float32(seq_len) / total).astype(o_ref.dtype)

    return kernel


# -------------------------------- tiled path ----------------------------------

def _make_tiled_kernel(seq_len: int, ts: int, needs_col_mask: bool):
    """Grid (batch_tiles, seq_tiles); seq axis is the (last, arbitrary) reduction."""

    def kernel(x_ref, o_ref, acc_ref):
        k = pl.program_id(1)
        nk = pl.num_programs(1)

        @pl.when(k == 0)
        def _init():
            acc_ref[...] = jnp.zeros_like(acc_ref)

        x = x_ref[...].astype(jnp.float32)                # (tb, ts)
        recip = pl.reciprocal(x, approx=False)            # exact, EUP slot

        if needs_col_mask:
            # Only the last seq tile can contain out-of-bounds (garbage) columns.
            @pl.when(k == nk - 1)
            def _masked_tail():
                col = k * ts + jax.lax.broadcasted_iota(jnp.int32, recip.shape, 1)
                # SELECT, not multiply: OOB garbage may contain zeros -> inf,
                # and inf * 0 would poison the sum with NaN.
                r = jnp.where(col < seq_len, recip, jnp.float32(0.0))
                acc_ref[...] += jnp.sum(r, axis=1, keepdims=True)

            @pl.when(k != nk - 1)
            def _interior():
                acc_ref[...] += jnp.sum(recip, axis=1, keepdims=True)
        else:
            acc_ref[...] += jnp.sum(recip, axis=1, keepdims=True)

        @pl.when(k == nk - 1)
        def _finalize():
            # Divide by the FULL sequence length, not the block width.
            o_ref[...] = (jnp.float32(seq_len) / acc_ref[...]).astype(o_ref.dtype)

    return kernel


# --------------------------------- wrapper ------------------------------------

def harmonic_mean_forward(
    input_seq: jax.Array,
    *,
    tb: int | None = None,
    ts: int | None = None,
    small_path_max_bytes: int = 1 << 19,   # 512 KiB
) -> jax.Array:
    """input_seq: (batch, seq_len) float -> (batch,) harmonic mean along seq."""
    batch, seq_len = input_seq.shape

    x = input_seq
    if x.dtype not in (jnp.float32, jnp.bfloat16, jnp.float16):
        x = x.astype(jnp.float32)           # ints / f64 -> f32 (rare path)
    out_dtype = x.dtype
    itemsize = jnp.dtype(x.dtype).itemsize
    sub = _sublane_multiple(x.dtype)

    # ---- small-input fast path: one block, no pipeline machinery ----
    if batch * seq_len * itemsize <= small_path_max_bytes:
        out = pl.pallas_call(
            _make_small_kernel(seq_len),
            out_shape=jax.ShapeDtypeStruct((batch, 1), out_dtype),
        )(x)
        return out[:, 0]

    # ---- tiled path ----
    # Batch tile: multiple of the sublane packing, and >= 2 programs on the
    # parallel axis whenever batch allows (v7x megacore sharding).
    if tb is None:
        if batch >= 2 * sub:
            tb = min(512, _ceil_to(pl.cdiv(batch, 2), sub))
        else:
            tb = _ceil_to(batch, sub)
    else:
        tb = _ceil_to(min(tb, _ceil_to(batch, sub)), sub)

    # Seq tile: multiple of 128, default 4096 (8 MiB f32 block) to amortize
    # per-grid-step overhead on v7x; clamp to the (rounded-up) sequence length.
    if ts is None:
        ts = 4096
    ts = max(128, min(_ceil_to(ts, 128), _ceil_to(seq_len, 128)))

    grid = (pl.cdiv(batch, tb), pl.cdiv(seq_len, ts))
    needs_col_mask = (seq_len % ts) != 0

    # Double-buffered input block + room for f32 elementwise temporaries.
    in_block_bytes = tb * ts * itemsize
    vmem_bytes = int(2 * in_block_bytes + 2 * tb * ts * 4 + (4 << 20))
    vmem_bytes = max(16 << 20, min(vmem_bytes, 48 << 20))

    out = pl.pallas_call(
        _make_tiled_kernel(seq_len, ts, needs_col_mask),
        out_shape=jax.ShapeDtypeStruct((batch, 1), out_dtype),
        grid_spec=pltpu.PrefetchScalarGridSpec(
            num_scalar_prefetch=0,
            grid=grid,
            in_specs=[pl.BlockSpec((tb, ts), lambda i, k: (i, k))],
            out_specs=pl.BlockSpec((tb, 1), lambda i, k: (i, 0)),
            scratch_shapes=[pltpu.VMEM((tb, 1), jnp.float32)],
        ),
        compiler_params=pltpu.CompilerParams(
            dimension_semantics=("parallel", "arbitrary"),
            vmem_limit_bytes=vmem_bytes,
        ),
        cost_estimate=pl.CostEstimate(
            flops=batch * seq_len,
            transcendentals=batch * seq_len,
            bytes_accessed=batch * seq_len * itemsize
            + batch * jnp.dtype(out_dtype).itemsize,
        ),
    )(x)

    # TODO(synk): output is (batch, 1) (lane-masked store); a lane-dense (1, batch)
    # layout would remove the vst.msk but needs a sublane->lane move. Output is tiny.
    return out[:, 0]


def reference_forward(input_seq: jax.Array) -> jax.Array:
    harmonic_sum = jnp.sum(1.0 / input_seq.astype(jnp.float32), axis=1)
    return input_seq.shape[1] / harmonic_sum


if __name__ == "__main__":
    key = jax.random.PRNGKey(0)
    k1, k2, k3, k4, k5, k_w, k_b = jax.random.split(key, 7)

    # Unused fake_module = nn.Linear(1, 2): parameters built deterministically
    # for parity with the PyTorch __init__; they do not affect forward().
    fake_w = jax.random.normal(k_w, (2, 1), dtype=jnp.float32) * 0.1
    fake_b = jax.random.normal(k_b, (2,), dtype=jnp.float32) * 0.1

    def check(x, out):
        out = jax.block_until_ready(out)
        ref = reference_forward(x)
        assert out.shape == (x.shape[0],), (out.shape, x.shape)
        assert jnp.allclose(out.astype(jnp.float32), ref, rtol=1e-5, atol=1e-5), (out, ref)

    # 1) Module-spec shape (batch=2, seq_len=8) -> small single-block path.
    x1 = jax.random.uniform(k1, (2, 8), dtype=jnp.float32, minval=0.5, maxval=2.0)
    check(x1, harmonic_mean_forward(x1))

    # 2) Slightly larger, still small path.
    x2 = jax.random.uniform(k2, (10, 300), dtype=jnp.float32, minval=0.5, maxval=2.0)
    check(x2, harmonic_mean_forward(x2))

    # 3) Forced tiled path: multi-tile accumulation, partial batch & seq blocks,
    #    pl.when-gated column mask (interior tiles unmasked).
    x3 = jax.random.uniform(k3, (20, 520), dtype=jnp.float32, minval=0.5, maxval=2.0)
    check(x3, harmonic_mean_forward(x3, tb=8, ts=128, small_path_max_bytes=0))

    # 4) Forced tiled path, exact tiling (no mask branch), grid (2, 2).
    x4 = jax.random.uniform(k4, (16, 256), dtype=jnp.float32, minval=0.5, maxval=2.0)
    check(x4, harmonic_mean_forward(x4, tb=8, ts=128, small_path_max_bytes=0))

    # 5) Tiled path with DEFAULT tiling (tb split for megacore, ts=4096, mask).
    x5 = jax.random.uniform(k5, (64, 4100), dtype=jnp.float32, minval=0.5, maxval=2.0)
    check(x5, harmonic_mean_forward(x5))

    print("KERNEL_OK")
</pallas_src>

<mosaic_0001>
module attributes {stable_mosaic.version = 11 : i64} {
  func.func @kernel(%arg0: memref<2x8xf32, #tpu.memory_space<vmem>>, %arg1: memref<2x1xf32, #tpu.memory_space<vmem>>) attributes {dimension_semantics = [], scalar_prefetch = 0 : i64, scratch_operands = 0 : i64, tpu.core_type = #tpu.core_type<tc>} {
    %c0 = arith.constant 0 : index
    %c0_0 = arith.constant 0 : index
    %0 = vector.load %arg0[%c0, %c0_0] : memref<2x8xf32, #tpu.memory_space<vmem>>, vector<2x8xf32>
    %1 = tpu.reciprocal %0 : vector<2x8xf32> -> vector<2x8xf32>
    %cst = arith.constant dense<0.000000e+00> : vector<2xf32>
    %2 = vector.multi_reduction <add>, %1, %cst [1] : vector<2x8xf32> to vector<2xf32>
    %3 = vector.shape_cast %2 : vector<2xf32> to vector<2x1xf32>
    %cst_1 = arith.constant 8.000000e+00 : f32
    %4 = vector.broadcast %cst_1 : f32 to vector<2x1xf32>
    %5 = arith.divf %4, %3 : vector<2x1xf32>
    %c0_2 = arith.constant 0 : index
    %c0_3 = arith.constant 0 : index
    %6 = vector.load %arg1[%c0_2, %c0_3] : memref<2x1xf32, #tpu.memory_space<vmem>>, vector<2x1xf32>
    tpu.vector_store %arg1[%c0_2, %c0_3], %5 {strides = array<i32>} : memref<2x1xf32, #tpu.memory_space<vmem>>, vector<2x1xf32>,
    return
  }
}

</mosaic_0001>

<llo_original>
// kernel: tpu_custom_call.1
$region0: #{tpu_custom_call.1}
  #allocation0 [shape = 'u32[]', space=smem, size = 0x4, offset = 0x4, fixed_abs, tag = 'smem constant byte address 0x4 - core index']
  #allocation1 [shape = 'u32[144,128]{1,0:T(1,128)}', space=vmem, size = 0x12000, scoped, tag = 'internal scratch']
  %s0 = inlined_call_operand.hbm [shape: f32[2,8], index: 0, kind: input, shape index: {}]
  %s1 = inlined_call_operand.vmem [shape: f32[2,1], index: 1, kind: output, shape index: {}]
  %s2 = sld [smem:[#allocation0]]
  $region18: #{tpu_custom_call.1} parent=0
    _
  %s4 = ssub.s32 1, %s2
  %s5 = scalar_select 0, %s4, %s2
  $region1: #{tpu_custom_call.1} parent=0
    #allocation2 [shape = 'u8[1024]{0}', space=vmem, size = 0x400, scoped, tag = 'input window, operand 0, single buffered']
    #allocation3 [shape = 's32[1]{0}', space=sflag, size = 0x4, scoped, tag = 'scoped memory for tpu_custom_call.1']
    %6 = vsyncpa [#allocation3], 0
    // Predicated region
    $region2: #{tpu_custom_call.1} parent=1 // pred_check
      _
    $region3: #{tpu_custom_call.1} parent=1 // pred_check_branch
      %8 = sbr.rel (0) target = $region5
    $region4: #{tpu_custom_call.1} parent=1 // pred_region
      %s10 = ssub.s32 32, 32
      %11 = vsyncadd [#allocation3], %s10
      %s13 = sshll.u32 [#allocation2], 4
      %s14 = int_to_ptr.vmem [resolvable:$true] %s13
      %16 = dma.hbm_to_vmem [thread:$0]  %s0, 32, %s14, [#allocation3]
    $region5: #{tpu_custom_call.1} parent=1 // pred_fallthru
      _
    // Predicated region
    $region6: #{tpu_custom_call.1} parent=1 // pred_check
      _
    $region7: #{tpu_custom_call.1} parent=1 // pred_check_branch
      %18 = sbr.rel (0) target = $region9
    $region8: #{tpu_custom_call.1} parent=1 // pred_region
      %19 = dma.done [#allocation3], 32
    $region9: #{tpu_custom_call.1} parent=1 // pred_fallthru
      _
    %v20 = vld [vmem:[#allocation2] sm:$0x3]
    %v21 = vrcp.pop %v20
    %vm22 = vcmask 58368
    %v23 = vsel %vm22, %v21, 0.0
    %24 = vadd.xlane.f32.xlu0 %v23
    %v25 = vpop.xlane.xlu0 %24
    %v26 = vrcp.pop %v25
    %v27 = vmul.f32 8.0, %v26
    %vm28 = vcmask 1024
    %29 = vst.msk [vmem:[%s1] sm:$0x3] %vm28, %v27
    // Predicated region
    $region10: #{tpu_custom_call.1} parent=1 // pred_check
      _
    $region11: #{tpu_custom_call.1} parent=1 // pred_check_branch
      %31 = sbr.rel (0) target = $region13
    $region12: #{tpu_custom_call.1} parent=1 // pred_region
      _
    $region13: #{tpu_custom_call.1} parent=1 // pred_fallthru
      _
    // Predicated region
    $region14: #{tpu_custom_call.1} parent=1 // pred_check
      _
    $region15: #{tpu_custom_call.1} parent=1 // pred_check_branch
      %33 = sbr.rel (0) target = $region17
    $region16: #{tpu_custom_call.1} parent=1 // pred_region
      _
    $region17: #{tpu_custom_call.1} parent=1 // pred_fallthru
      _
    %34 = vsyncpa [#allocation3], 1

</llo_original>
